<compile_context>
chip_gen: v6e
topology: v6e:2x2x1
jax: 0.10.0
libtpu: 0.0.40
codegen_flags: <defaults>
</compile_context>

<pallas_src>
import functools

import jax
import jax.numpy as jnp
from jax.experimental import pallas as pl
from jax.experimental.pallas import tpu as pltpu


def _round_up(x, m):
    return (x + m - 1) // m * m


def _cdiv(a, b):
    return (a + b - 1) // b


# ----------------------------- Pallas kernel -------------------------------

def _ae_kernel(x_ref,
               w1_ref, b1_ref,          # Encoder.enc1            (inp_dim -> 64)
               wmu_ref, bmu_ref,        # Encoder.mu              (64 -> emb_dim)
               wf_ref, bf_ref,          # folded Enc.mu + Dec.dec1 (64 -> 64)
               wd2_ref, bd2_ref,        # Decoder.dec2            (64 -> inp_dim)
               mu_ref, sse_ref,
               *, tm, pack, n_valid, n_pad):
    i = pl.program_id(0)
    emb_dim = wmu_ref.shape[1]

    xv = x_ref[...]                           # (tm, inp_dim); f32 or bf16 stream
    x_f32 = xv.astype(jnp.float32)            # SSE is always computed in f32
    x_mm = xv.astype(w1_ref.dtype)            # MXU operand dtype (f32 or bf16)

    # Encoder: h1 = relu(x @ W1 + b1)
    h1 = jnp.dot(x_mm, w1_ref[...], preferred_element_type=jnp.float32) + b1_ref[...]
    h1 = jnp.maximum(h1, 0.0)
    h1m = h1.astype(wmu_ref.dtype)

    # mu = h1 @ Wmu + bmu  (output only; off the dependent matmul chain)
    mu = jnp.dot(h1m, wmu_ref[...], preferred_element_type=jnp.float32) + bmu_ref[...]

    # Folded mu+dec1: h2 = relu(h1 @ (Wmu Wd1) + (bmu Wd1 + bd1))
    h2 = jnp.dot(h1m, wf_ref[...], preferred_element_type=jnp.float32) + bf_ref[...]
    h2 = jnp.maximum(h2, 0.0)

    # Decoder.dec2: y = h2 @ Wd2 + bd2  (stays in VMEM; only feeds the SSE)
    y = (jnp.dot(h2.astype(wd2_ref.dtype), wd2_ref[...],
                 preferred_element_type=jnp.float32) + bd2_ref[...])

    # Lane-dense mu writeback.  mu_ref block is (tm//pack, pack*emb_dim) = 128
    # lanes wide; group p of the tile's rows lands in lane slot p.  Each store
    # is a static contiguous sublane slice -> static lane slice (no reshape,
    # no strided access), so lowering is trivial; the host undoes the grouping.
    if pack > 1:
        q = tm // pack
        for p in range(pack):                          # static, tiny loop
            mu_ref[:, p * emb_dim:(p + 1) * emb_dim] = mu[p * q:(p + 1) * q, :]
    else:
        mu_ref[...] = mu

    # Reconstruction sum-of-squared-errors in f32 against the (upcast) x.
    diff = x_f32 - y
    if n_pad != n_valid:      # static: only emitted when zero-padded rows exist
        row = i * tm + jax.lax.broadcasted_iota(jnp.int32, (tm, 1), 0)
        diff = jnp.where(row < n_valid, diff, 0.0)
    tile_sse = jnp.sum(diff * diff)

    # Per-tile partial SSE written into a lane-dense (8,128) block so the grid
    # axis can be "parallel" (no cross-iteration accumulator / RMW output).
    sub = jax.lax.broadcasted_iota(jnp.int32, (8, 128), 0)
    lane = jax.lax.broadcasted_iota(jnp.int32, (8, 128), 1)
    sse_ref[...] = jnp.where((sub == 0) & (lane == 0), tile_sse, 0.0)


# ------------------------------- wrapper ------------------------------------

@functools.partial(jax.jit, static_argnames=("tm", "matmul_dtype", "x_dtype"))
def nn_embedding_forward(x, params, *, tm=1024,
                         matmul_dtype=jnp.bfloat16, x_dtype=jnp.float32):
    """x: (B, seq_len, H, W) float32. Returns {'emb', 'rec_loss', 'var_loss'}.

    matmul_dtype=jnp.float32 + x_dtype=jnp.float32 gives exact PyTorch parity.
    The bf16 defaults/options trade a tiny accuracy delta for ~2x less HBM
    traffic and the fast MXU path on v5e/v6e/v7x.
    """
    (w1, b1, wmu, bmu, wd1, bd1, wd2, bd2) = params
    B, S, H, W = x.shape
    inp_dim = H * W
    emb_dim = wmu.shape[1]
    N = B * S

    # mu row-packing factor: pack rows so the mu output block is 128 lanes wide.
    pack = 128 // emb_dim if (0 < emb_dim < 128 and 128 % emb_dim == 0) else 1
    row_align = 8 * pack            # keeps the packed mu block (8,128)-aligned

    # Row tile: multiple of row_align, capped so (a) it never exceeds the padded
    # row count and (b) the 'parallel' grid has >= 2 tiles whenever N allows it
    # (keeps both v7x TensorCores busy).
    tm = _round_up(max(int(tm), row_align), row_align)
    tm = min(tm, _round_up(max(_cdiv(N, 2), 1), row_align))
    n_pad = _round_up(N, tm)
    num_tiles = n_pad // tm

    x_flat = x.reshape(N, inp_dim).astype(x_dtype)
    if n_pad != N:
        x_flat = jnp.pad(x_flat, ((0, n_pad - N), (0, 0)))

    f32 = jnp.float32
    w1f, wmuf, wd1f, wd2f = (w.astype(f32) for w in (w1, wmu, wd1, wd2))
    b1f, bmuf, bd1f, bd2f = (b.astype(f32) for b in (b1, bmu, bd1, bd2))
    # Fold Encoder.mu + Decoder.dec1 (no nonlinearity between them) in f32.
    w_fold = wmuf @ wd1f                       # (64, 64)
    b_fold = bmuf @ wd1f + bd1f                # (1, 64)

    # Matmul-dtype weights (bf16 halves weight DMA and hits the fast MXU path
    # on all generations); biases stay f32, added to the f32 accumulator.
    w1c, wmuc, wfc, wd2c = (w.astype(matmul_dtype) for w in (w1f, wmuf, w_fold, wd2f))

    full = lambda a: pl.BlockSpec(a.shape, lambda i: (0, 0))
    # NOTE: weight/bias blocks have a constant index, so they stay resident;
    # pl.Buffered(1) pinning skipped (negligible VMEM at these sizes).

    if pack > 1:
        mu_shape = (n_pad // pack, pack * emb_dim)
        mu_block = (tm // pack, pack * emb_dim)
    else:
        mu_shape = (n_pad, emb_dim)
        mu_block = (tm, emb_dim)

    xbytes = jnp.dtype(x_dtype).itemsize
    wbytes = jnp.dtype(matmul_dtype).itemsize
    flops = 2 * N * (inp_dim * 64 + 64 * emb_dim + 64 * 64 + 64 * inp_dim)
    bytes_accessed = int(
        n_pad * inp_dim * xbytes                     # x read
        + n_pad * emb_dim * 4                        # mu write (packed, same bytes)
        + num_tiles * 8 * 128 * 4                    # SSE partials write
        + (int(w1c.size) + int(wmuc.size) + int(wfc.size) + int(wd2c.size)) * wbytes
        + (int(b1f.size) + int(bmuf.size) + int(b_fold.size) + int(bd2f.size)) * 4)

    kernel = functools.partial(_ae_kernel, tm=tm, pack=pack, n_valid=N, n_pad=n_pad)

    mu_out, sse_partial = pl.pallas_call(
        kernel,
        out_shape=(
            jax.ShapeDtypeStruct(mu_shape, jnp.float32),
            jax.ShapeDtypeStruct((num_tiles * 8, 128), jnp.float32),
        ),
        grid_spec=pltpu.PrefetchScalarGridSpec(
            num_scalar_prefetch=0,
            grid=(num_tiles,),
            in_specs=[
                pl.BlockSpec((tm, inp_dim), lambda i: (i, 0)),   # x rows
                full(w1c), full(b1f),
                full(wmuc), full(bmuf),
                full(wfc), full(b_fold),
                full(wd2c), full(bd2f),
            ],
            out_specs=[
                pl.BlockSpec(mu_block, lambda i: (i, 0)),        # packed mu rows
                pl.BlockSpec((8, 128), lambda i: (i, 0)),        # per-tile SSE slab
            ],
        ),
        compiler_params=pltpu.CompilerParams(
            dimension_semantics=("parallel",),                   # megacore-shardable
        ),
        cost_estimate=pl.CostEstimate(
            flops=flops, transcendentals=0, bytes_accessed=bytes_accessed),
    )(x_flat, w1c, b1f, wmuc, bmuf, wfc, b_fold, wd2c, bd2f)

    # Glue (reshapes / scalar math) stays in plain JAX.
    rec_loss = jnp.sum(sse_partial) / jnp.float32(N * inp_dim)   # nn.MSELoss (mean)

    if pack > 1:   # undo the per-tile row grouping: cheap host-side relayout
        q = tm // pack
        mu_full = (mu_out.reshape(num_tiles, q, pack, emb_dim)
                   .transpose(0, 2, 1, 3)
                   .reshape(n_pad, emb_dim))
    else:
        mu_full = mu_out
    emb = mu_full[:N].reshape(B, S, emb_dim)                     # z.view(-1, seq_len, emb_dim)

    # params.use_VAE == False path: z = mu, var_loss = 0.0
    # TODO(synk): use_VAE=True branch (logvar head, reparametrize + KL divergence)
    # is disabled in this config and not implemented in-kernel.
    var_loss = jnp.float32(0.0)
    return {"emb": emb, "rec_loss": rec_loss, "var_loss": var_loss}


# ---------------------- deterministic parameter init -----------------------

def _linear_params(key, in_dim, out_dim):
    """PyTorch nn.Linear-style init; weight returned already transposed (in, out)."""
    kw, kb = jax.random.split(key)
    bound = 1.0 / jnp.sqrt(jnp.float32(in_dim))
    w = jax.random.uniform(kw, (in_dim, out_dim), jnp.float32, -bound, bound)
    b = jax.random.uniform(kb, (1, out_dim), jnp.float32, -bound, bound)
    return w, b


def init_params(key, inp_dim, emb_dim):
    k1, k2, k3, k4 = jax.random.split(key, 4)
    w1, b1 = _linear_params(k1, inp_dim, 64)      # Encoder.enc1
    wmu, bmu = _linear_params(k2, 64, emb_dim)    # Encoder.mu
    wd1, bd1 = _linear_params(k3, emb_dim, 64)    # Decoder.dec1
    wd2, bd2 = _linear_params(k4, 64, inp_dim)    # Decoder.dec2
    return (w1, b1, wmu, bmu, wd1, bd1, wd2, bd2)


def _reference_forward(x, params):
    (w1, b1, wmu, bmu, wd1, bd1, wd2, bd2) = params
    B, S, H, W = x.shape
    xf = x.reshape(-1, H * W)
    h1 = jnp.maximum(xf @ w1 + b1, 0.0)
    mu = h1 @ wmu + bmu
    h2 = jnp.maximum(mu @ wd1 + bd1, 0.0)
    y = h2 @ wd2 + bd2
    rec = jnp.mean((xf - y) ** 2)
    return mu.reshape(B, S, -1), rec


if __name__ == "__main__":
    B, S, H, W = 2, 8, 16, 16          # grid_dim = (16, 16), seq_len = 8
    EMB = 32                           # params.spatial_embedding_dim

    key = jax.random.PRNGKey(0)
    kx, kp = jax.random.split(key)
    x = jax.random.normal(kx, (B, S, H, W), jnp.float32)
    params = init_params(kp, H * W, EMB)

    ref_emb, ref_rec = _reference_forward(x, params)

    # f32 matmuls + f32 x: exact parity with the PyTorch module.
    out_f32 = nn_embedding_forward(x, params, matmul_dtype=jnp.float32)
    jax.block_until_ready(out_f32)
    assert out_f32["emb"].shape == (B, S, EMB)
    assert jnp.allclose(out_f32["emb"], ref_emb, atol=1e-4, rtol=1e-4)
    assert jnp.allclose(out_f32["rec_loss"], ref_rec, atol=1e-4, rtol=1e-4)
    assert float(out_f32["var_loss"]) == 0.0

    # Default fast path: bf16 MXU weights, f32 x stream (looser tolerance).
    out = nn_embedding_forward(x, params)
    jax.block_until_ready(out)
    assert jnp.allclose(out["emb"], ref_emb, atol=5e-2, rtol=5e-2)
    assert jnp.allclose(out["rec_loss"], ref_rec, atol=5e-2, rtol=5e-2)

    # bf16 x stream too (halves the dominant HBM read).
    out_bx = nn_embedding_forward(x, params, x_dtype=jnp.bfloat16)
    jax.block_until_ready(out_bx)
    assert jnp.allclose(out_bx["emb"], ref_emb, atol=5e-2, rtol=5e-2)
    assert jnp.allclose(out_bx["rec_loss"], ref_rec, atol=5e-2, rtol=5e-2)

    # Multi-tile path (grid >= 2, 'parallel' axis, packed-mu multi-block, SSE partials).
    x_mt = jax.random.normal(jax.random.PRNGKey(1), (4, 16, H, W), jnp.float32)
    ref_emb_mt, ref_rec_mt = _reference_forward(x_mt, params)
    out_mt = nn_embedding_forward(x_mt, params, matmul_dtype=jnp.float32)
    jax.block_until_ready(out_mt)
    assert jnp.allclose(out_mt["emb"], ref_emb_mt, atol=1e-4, rtol=1e-4)
    assert jnp.allclose(out_mt["rec_loss"], ref_rec_mt, atol=1e-4, rtol=1e-4)

    # Ragged row count exercises the zero-pad + in-kernel row-mask path.
    x_r = x[:1, :5]
    ref_emb_r, ref_rec_r = _reference_forward(x_r, params)
    out_r = nn_embedding_forward(x_r, params, matmul_dtype=jnp.float32)
    jax.block_until_ready(out_r)
    assert jnp.allclose(out_r["emb"], ref_emb_r, atol=1e-4, rtol=1e-4)
    assert jnp.allclose(out_r["rec_loss"], ref_rec_r, atol=1e-4, rtol=1e-4)

    print("KERNEL_OK")
</pallas_src>

<mosaic_0001>
module attributes {stable_mosaic.version = 11 : i64} {
  func.func @_ae_kernel(%arg0: i32, %arg1: memref<32x256xf32, #tpu.memory_space<vmem>>, %arg2: memref<256x64xf32, #tpu.memory_space<vmem>>, %arg3: memref<1x64xf32, #tpu.memory_space<vmem>>, %arg4: memref<64x32xf32, #tpu.memory_space<vmem>>, %arg5: memref<1x32xf32, #tpu.memory_space<vmem>>, %arg6: memref<64x64xf32, #tpu.memory_space<vmem>>, %arg7: memref<1x64xf32, #tpu.memory_space<vmem>>, %arg8: memref<64x256xf32, #tpu.memory_space<vmem>>, %arg9: memref<1x256xf32, #tpu.memory_space<vmem>>, %arg10: memref<8x128xf32, #tpu.memory_space<vmem>>, %arg11: memref<8x128xf32, #tpu.memory_space<vmem>>) attributes {dimension_semantics = [#tpu.dimension_semantics<parallel>], iteration_bounds = array<i64: 1>, scalar_prefetch = 0 : i64, scratch_operands = 0 : i64, tpu.core_type = #tpu.core_type<tc>, window_params = [{transform_indices = @transform_0, window_bounds = array<i64: 32, 256>}, {pipeline_mode = #tpu.pipeline_mode<synchronous>, transform_indices = @transform_1, window_bounds = array<i64: 256, 64>}, {pipeline_mode = #tpu.pipeline_mode<synchronous>, transform_indices = @transform_2, window_bounds = array<i64: 1, 64>}, {pipeline_mode = #tpu.pipeline_mode<synchronous>, transform_indices = @transform_3, window_bounds = array<i64: 64, 32>}, {pipeline_mode = #tpu.pipeline_mode<synchronous>, transform_indices = @transform_4, window_bounds = array<i64: 1, 32>}, {pipeline_mode = #tpu.pipeline_mode<synchronous>, transform_indices = @transform_5, window_bounds = array<i64: 64, 64>}, {pipeline_mode = #tpu.pipeline_mode<synchronous>, transform_indices = @transform_6, window_bounds = array<i64: 1, 64>}, {pipeline_mode = #tpu.pipeline_mode<synchronous>, transform_indices = @transform_7, window_bounds = array<i64: 64, 256>}, {pipeline_mode = #tpu.pipeline_mode<synchronous>, transform_indices = @transform_8, window_bounds = array<i64: 1, 256>}, {transform_indices = @transform_9, window_bounds = array<i64: 8, 128>}, {transform_indices = @transform_10, window_bounds = array<i64: 8, 128>}]} {
    %c0 = arith.constant 0 : index
    %c0_0 = arith.constant 0 : index
    %0 = vector.load %arg1[%c0, %c0_0] : memref<32x256xf32, #tpu.memory_space<vmem>>, vector<32x256xf32>
    %c0_1 = arith.constant 0 : index
    %c0_2 = arith.constant 0 : index
    %1 = vector.load %arg2[%c0_1, %c0_2] : memref<256x64xf32, #tpu.memory_space<vmem>>, vector<256x64xf32>
    %cst = arith.constant dense<0.000000e+00> : vector<32x64xf32>
    %2 = tpu.matmul %0, %1, %cst {dimension_numbers = #tpu.dot_dimension_numbers<[1], [0], [0], [1], [0, 0, 1, 1], [], []>} : vector<32x256xf32>, vector<256x64xf32>, vector<32x64xf32> -> vector<32x64xf32>
    %c0_3 = arith.constant 0 : index
    %c0_4 = arith.constant 0 : index
    %3 = vector.load %arg3[%c0_3, %c0_4] : memref<1x64xf32, #tpu.memory_space<vmem>>, vector<1x64xf32>
    %4 = vector.broadcast %3 : vector<1x64xf32> to vector<32x64xf32>
    %5 = arith.addf %2, %4 : vector<32x64xf32>
    %cst_5 = arith.constant 0.000000e+00 : f32
    %6 = vector.broadcast %cst_5 : f32 to vector<32x64xf32>
    %7 = arith.maximumf %5, %6 : vector<32x64xf32>
    %c0_6 = arith.constant 0 : index
    %c0_7 = arith.constant 0 : index
    %8 = vector.load %arg4[%c0_6, %c0_7] : memref<64x32xf32, #tpu.memory_space<vmem>>, vector<64x32xf32>
    %cst_8 = arith.constant dense<0.000000e+00> : vector<32x32xf32>
    %9 = tpu.matmul %7, %8, %cst_8 {dimension_numbers = #tpu.dot_dimension_numbers<[1], [0], [0], [1], [0, 0, 1, 1], [], []>} : vector<32x64xf32>, vector<64x32xf32>, vector<32x32xf32> -> vector<32x32xf32>
    %c0_9 = arith.constant 0 : index
    %c0_10 = arith.constant 0 : index
    %10 = vector.load %arg5[%c0_9, %c0_10] : memref<1x32xf32, #tpu.memory_space<vmem>>, vector<1x32xf32>
    %11 = vector.broadcast %10 : vector<1x32xf32> to vector<32x32xf32>
    %12 = arith.addf %9, %11 : vector<32x32xf32>
    %c0_11 = arith.constant 0 : index
    %c0_12 = arith.constant 0 : index
    %13 = vector.load %arg6[%c0_11, %c0_12] : memref<64x64xf32, #tpu.memory_space<vmem>>, vector<64x64xf32>
    %cst_13 = arith.constant dense<0.000000e+00> : vector<32x64xf32>
    %14 = tpu.matmul %7, %13, %cst_13 {dimension_numbers = #tpu.dot_dimension_numbers<[1], [0], [0], [1], [0, 0, 1, 1], [], []>} : vector<32x64xf32>, vector<64x64xf32>, vector<32x64xf32> -> vector<32x64xf32>
    %c0_14 = arith.constant 0 : index
    %c0_15 = arith.constant 0 : index
    %15 = vector.load %arg7[%c0_14, %c0_15] : memref<1x64xf32, #tpu.memory_space<vmem>>, vector<1x64xf32>
    %16 = vector.broadcast %15 : vector<1x64xf32> to vector<32x64xf32>
    %17 = arith.addf %14, %16 : vector<32x64xf32>
    %cst_16 = arith.constant 0.000000e+00 : f32
    %18 = vector.broadcast %cst_16 : f32 to vector<32x64xf32>
    %19 = arith.maximumf %17, %18 : vector<32x64xf32>
    %c0_17 = arith.constant 0 : index
    %c0_18 = arith.constant 0 : index
    %20 = vector.load %arg8[%c0_17, %c0_18] : memref<64x256xf32, #tpu.memory_space<vmem>>, vector<64x256xf32>
    %cst_19 = arith.constant dense<0.000000e+00> : vector<32x256xf32>
    %21 = tpu.matmul %19, %20, %cst_19 {dimension_numbers = #tpu.dot_dimension_numbers<[1], [0], [0], [1], [0, 0, 1, 1], [], []>} : vector<32x64xf32>, vector<64x256xf32>, vector<32x256xf32> -> vector<32x256xf32>
    %c0_20 = arith.constant 0 : index
    %c0_21 = arith.constant 0 : index
    %22 = vector.load %arg9[%c0_20, %c0_21] : memref<1x256xf32, #tpu.memory_space<vmem>>, vector<1x256xf32>
    %23 = vector.broadcast %22 : vector<1x256xf32> to vector<32x256xf32>
    %24 = arith.addf %21, %23 : vector<32x256xf32>
    %25 = vector.extract_strided_slice %12 {offsets = [0, 0], sizes = [8, 32], strides = [1, 1]} : vector<32x32xf32> to vector<8x32xf32>
    %c0_22 = arith.constant 0 : index
    %c0_23 = arith.constant 0 : index
    %26 = vector.load %arg10[%c0_22, %c0_23] : memref<8x128xf32, #tpu.memory_space<vmem>>, vector<8x32xf32>
    tpu.vector_store %arg10[%c0_22, %c0_23], %25 {strides = array<i32>} : memref<8x128xf32, #tpu.memory_space<vmem>>, vector<8x32xf32>,
    %27 = vector.extract_strided_slice %12 {offsets = [8, 0], sizes = [8, 32], strides = [1, 1]} : vector<32x32xf32> to vector<8x32xf32>
    %c0_24 = arith.constant 0 : index
    %c32 = arith.constant 32 : index
    %28 = vector.load %arg10[%c0_24, %c32] : memref<8x128xf32, #tpu.memory_space<vmem>>, vector<8x32xf32>
    tpu.vector_store %arg10[%c0_24, %c32], %27 {strides = array<i32>} : memref<8x128xf32, #tpu.memory_space<vmem>>, vector<8x32xf32>,
    %29 = vector.extract_strided_slice %12 {offsets = [16, 0], sizes = [8, 32], strides = [1, 1]} : vector<32x32xf32> to vector<8x32xf32>
    %c0_25 = arith.constant 0 : index
    %c64 = arith.constant 64 : index
    %30 = vector.load %arg10[%c0_25, %c64] : memref<8x128xf32, #tpu.memory_space<vmem>>, vector<8x32xf32>
    tpu.vector_store %arg10[%c0_25, %c64], %29 {strides = array<i32>} : memref<8x128xf32, #tpu.memory_space<vmem>>, vector<8x32xf32>,
    %31 = vector.extract_strided_slice %12 {offsets = [24, 0], sizes = [8, 32], strides = [1, 1]} : vector<32x32xf32> to vector<8x32xf32>
    %c0_26 = arith.constant 0 : index
    %c96 = arith.constant 96 : index
    %32 = vector.load %arg10[%c0_26, %c96] : memref<8x128xf32, #tpu.memory_space<vmem>>, vector<8x32xf32>
    tpu.vector_store %arg10[%c0_26, %c96], %31 {strides = array<i32>} : memref<8x128xf32, #tpu.memory_space<vmem>>, vector<8x32xf32>,
    %33 = arith.subf %0, %24 : vector<32x256xf32>
    %c32_i32 = arith.constant 32 : i32
    %34 = arith.muli %arg0, %c32_i32 : i32
    %35 = tpu.iota {dimensions = array<i32: 0>} : vector<32x1xi32>
    %36 = vector.broadcast %34 : i32 to vector<32x1xi32>
    %37 = arith.addi %36, %35 : vector<32x1xi32>
    %c16_i32 = arith.constant 16 : i32
    %38 = vector.broadcast %c16_i32 : i32 to vector<32x1xi32>
    %39 = arith.cmpi slt, %37, %38 : vector<32x1xi32>
    %cst_27 = arith.constant 0.000000e+00 : f32
    %40 = vector.shape_cast %39 : vector<32x1xi1> to vector<32x1xi1>
    %41 = vector.broadcast %40 : vector<32x1xi1> to vector<32x256xi1>
    %42 = vector.broadcast %cst_27 : f32 to vector<32x256xf32>
    %43 = arith.select %41, %33, %42 : vector<32x256xi1>, vector<32x256xf32>
    %44 = arith.mulf %43, %43 : vector<32x256xf32>
    %45 = vector.shape_cast %44 : vector<32x256xf32> to vector<1x32x256xf32>
    %cst_28 = arith.constant dense<0.000000e+00> : vector<1xf32>
    %46 = vector.multi_reduction <add>, %45, %cst_28 [1, 2] : vector<1x32x256xf32> to vector<1xf32>
    %47 = vector.shape_cast %46 : vector<1xf32> to vector<1x1x1xf32>
    %48 = vector.extract %47[0, 0, 0] : f32 from vector<1x1x1xf32>
    %49 = tpu.iota {dimensions = array<i32: 0>} : vector<8x128xi32>
    %50 = tpu.iota {dimensions = array<i32: 1>} : vector<8x128xi32>
    %c0_i32 = arith.constant 0 : i32
    %51 = vector.broadcast %c0_i32 : i32 to vector<8x128xi32>
    %52 = arith.cmpi eq, %49, %51 : vector<8x128xi32>
    %c0_i32_29 = arith.constant 0 : i32
    %53 = vector.broadcast %c0_i32_29 : i32 to vector<8x128xi32>
    %54 = arith.cmpi eq, %50, %53 : vector<8x128xi32>
    %55 = arith.andi %52, %54 : vector<8x128xi1>
    %cst_30 = arith.constant 0.000000e+00 : f32
    %56 = vector.broadcast %48 : f32 to vector<8x128xf32>
    %57 = vector.broadcast %cst_30 : f32 to vector<8x128xf32>
    %58 = arith.select %55, %56, %57 : vector<8x128xi1>, vector<8x128xf32>
    %c0_31 = arith.constant 0 : index
    %c0_32 = arith.constant 0 : index
    %59 = vector.load %arg11[%c0_31, %c0_32] : memref<8x128xf32, #tpu.memory_space<vmem>>, vector<8x128xf32>
    tpu.vector_store %arg11[%c0_31, %c0_32], %58 {strides = array<i32>} : memref<8x128xf32, #tpu.memory_space<vmem>>, vector<8x128xf32>,
    return
  }
  func.func @transform_0(%arg0: i32) -> (i32, i32) {
    %c0_i32 = arith.constant 0 : i32
    %c0_i32_0 = arith.constant 0 : i32
    return %arg0, %c0_i32 : i32, i32
  }
  func.func @transform_1(%arg0: i32) -> (i32, i32) {
    %c0_i32 = arith.constant 0 : i32
    %c0_i32_0 = arith.constant 0 : i32
    %c0_i32_1 = arith.constant 0 : i32
    return %c0_i32, %c0_i32_0 : i32, i32
  }
  func.func @transform_2(%arg0: i32) -> (i32, i32) {
    %c0_i32 = arith.constant 0 : i32
    %c0_i32_0 = arith.constant 0 : i32
    %c0_i32_1 = arith.constant 0 : i32
    return %c0_i32, %c0_i32_0 : i32, i32
  }
  func.func @transform_3(%arg0: i32) -> (i32, i32) {
    %c0_i32 = arith.constant 0 : i32
    %c0_i32_0 = arith.constant 0 : i32
    %c0_i32_1 = arith.constant 0 : i32
    return %c0_i32, %c0_i32_0 : i32, i32
  }
  func.func @transform_4(%arg0: i32) -> (i32, i32) {
    %c0_i32 = arith.constant 0 : i32
    %c0_i32_0 = arith.constant 0 : i32
    %c0_i32_1 = arith.constant 0 : i32
    return %c0_i32, %c0_i32_0 : i32, i32
  }
  func.func @transform_5(%arg0: i32) -> (i32, i32) {
    %c0_i32 = arith.constant 0 : i32
    %c0_i32_0 = arith.constant 0 : i32
    %c0_i32_1 = arith.constant 0 : i32
    return %c0_i32, %c0_i32_0 : i32, i32
  }
  func.func @transform_6(%arg0: i32) -> (i32, i32) {
    %c0_i32 = arith.constant 0 : i32
    %c0_i32_0 = arith.constant 0 : i32
    %c0_i32_1 = arith.constant 0 : i32
    return %c0_i32, %c0_i32_0 : i32, i32
  }
  func.func @transform_7(%arg0: i32) -> (i32, i32) {
    %c0_i32 = arith.constant 0 : i32
    %c0_i32_0 = arith.constant 0 : i32
    %c0_i32_1 = arith.constant 0 : i32
    return %c0_i32, %c0_i32_0 : i32, i32
  }
  func.func @transform_8(%arg0: i32) -> (i32, i32) {
    %c0_i32 = arith.constant 0 : i32
    %c0_i32_0 = arith.constant 0 : i32
    %c0_i32_1 = arith.constant 0 : i32
    return %c0_i32, %c0_i32_0 : i32, i32
  }
  func.func @transform_9(%arg0: i32) -> (i32, i32) {
    %c0_i32 = arith.constant 0 : i32
    %c0_i32_0 = arith.constant 0 : i32
    return %arg0, %c0_i32 : i32, i32
  }
  func.func @transform_10(%arg0: i32) -> (i32, i32) {
    %c0_i32 = arith.constant 0 : i32
    %c0_i32_0 = arith.constant 0 : i32
    return %arg0, %c0_i32 : i32, i32
  }
}

</mosaic_0001>

<llo_original>
// kernel: nn_embedding_forward.1
$region0: #{nn_embedding_forward.1}
  #allocation0 [shape = 'u32[]', space=smem, size = 0x4, offset = 0x4, fixed_abs, tag = 'smem constant byte address 0x4 - core index']
  #allocation1 [shape = 'u32[144,128]{1,0:T(1,128)}', space=vmem, size = 0x12000, scoped, tag = 'internal scratch']
  %s0 = inlined_call_operand.vmem [shape: f32[32,256], index: 0, kind: input, shape index: {}]
  %s1 = inlined_call_operand.vmem [shape: f32[256,64], index: 1, kind: input, shape index: {}]
  %s2 = inlined_call_operand.vmem [shape: f32[1,64], index: 2, kind: input, shape index: {}]
  %s3 = inlined_call_operand.vmem [shape: f32[64,32], index: 3, kind: input, shape index: {}]
  %s4 = inlined_call_operand.vmem [shape: f32[1,32], index: 4, kind: input, shape index: {}]
  %s5 = inlined_call_operand.vmem [shape: f32[64,64], index: 5, kind: input, shape index: {}]
  %s6 = inlined_call_operand.vmem [shape: f32[1,64], index: 6, kind: input, shape index: {}]
  %s7 = inlined_call_operand.vmem [shape: f32[64,256], index: 7, kind: input, shape index: {}]
  %s8 = inlined_call_operand.vmem [shape: f32[1,256], index: 8, kind: input, shape index: {}]
  %s9 = inlined_call_operand.vmem [shape: f32[8,128], index: 9, kind: output, shape index: {0}]
  %s10 = inlined_call_operand.vmem [shape: f32[8,128], index: 10, kind: output, shape index: {1}]
  %11 = xla_tuple %s9, %s10
  %s12 = sld [smem:[#allocation0]]
  $region54: #{nn_embedding_forward.1} parent=0
    _
  %s14 = ssub.s32 1, %s12
  %s15 = scalar_select 0, %s14, %s12
  // Predicated region
  $region2: #{nn_embedding_forward.1} parent=0 // pred_check
    _
  $region3: #{nn_embedding_forward.1} parent=0 // pred_check_branch
    %17 = sbr.rel (0) target = $region5
  $region4: #{nn_embedding_forward.1} parent=0 // pred_region
    _
  $region5: #{nn_embedding_forward.1} parent=0 // pred_fallthru
    _
  // Predicated region
  $region6: #{nn_embedding_forward.1} parent=0 // pred_check
    _
  $region7: #{nn_embedding_forward.1} parent=0 // pred_check_branch
    %19 = sbr.rel (0) target = $region9
  $region8: #{nn_embedding_forward.1} parent=0 // pred_region
    _
  $region9: #{nn_embedding_forward.1} parent=0 // pred_fallthru
    _
  // Predicated region
  $region10: #{nn_embedding_forward.1} parent=0 // pred_check
    _
  $region11: #{nn_embedding_forward.1} parent=0 // pred_check_branch
    %21 = sbr.rel (0) target = $region13
  $region12: #{nn_embedding_forward.1} parent=0 // pred_region
    _
  $region13: #{nn_embedding_forward.1} parent=0 // pred_fallthru
    _
  // Predicated region
  $region14: #{nn_embedding_forward.1} parent=0 // pred_check
    _
  $region15: #{nn_embedding_forward.1} parent=0 // pred_check_branch
    %23 = sbr.rel (0) target = $region17
  $region16: #{nn_embedding_forward.1} parent=0 // pred_region
    _
  $region17: #{nn_embedding_forward.1} parent=0 // pred_fallthru
    _
  // Predicated region
  $region18: #{nn_embedding_forward.1} parent=0 // pred_check
    _
  $region19: #{nn_embedding_forward.1} parent=0 // pred_check_branch
    %25 = sbr.rel (0) target = $region21
  $region20: #{nn_embedding_forward.1} parent=0 // pred_region
    _
  $region21: #{nn_embedding_forward.1} parent=0 // pred_fallthru
    _
  // Predicated region
  $region22: #{nn_embedding_forward.1} parent=0 // pred_check
    _
  $region23: #{nn_embedding_forward.1} parent=0 // pred_check_branch
    %27 = sbr.rel (0) target = $region25
  $region24: #{nn_embedding_forward.1} parent=0 // pred_region
    _
  $region25: #{nn_embedding_forward.1} parent=0 // pred_fallthru
    _
  // Predicated region
  $region26: #{nn_embedding_forward.1} parent=0 // pred_check
    _
  $region27: #{nn_embedding_forward.1} parent=0 // pred_check_branch
    %29 = sbr.rel (0) target = $region29
  $region28: #{nn_embedding_forward.1} parent=0 // pred_region
    _
  $region29: #{nn_embedding_forward.1} parent=0 // pred_fallthru
    _
  // Predicated region
  $region30: #{nn_embedding_forward.1} parent=0 // pred_check
    _
  $region31: #{nn_embedding_forward.1} parent=0 // pred_check_branch
    %31 = sbr.rel (0) target = $region33
  $region32: #{nn_embedding_forward.1} parent=0 // pred_region
    _
  $region33: #{nn_embedding_forward.1} parent=0 // pred_fallthru
    _
  // Predicated region
  $region34: #{nn_embedding_forward.1} parent=0 // pred_check
    _
  $region35: #{nn_embedding_forward.1} parent=0 // pred_check_branch
    %33 = sbr.rel (0) target = $region37
  $region36: #{nn_embedding_forward.1} parent=0 // pred_region
    _
  $region37: #{nn_embedding_forward.1} parent=0 // pred_fallthru
    _
  %v34 = vld [vmem:[%s0] sm:$0xff]
  %v35 = vld [vmem:[%s0 + $0x8] sm:$0xff]
  %v36 = vld [vmem:[%s0 + $0x10] sm:$0xff]
  %v37 = vld [vmem:[%s0 + $0x18] sm:$0xff]
  %v38 = vld [vmem:[%s0 + $0x20] sm:$0xff]
  %v39 = vld [vmem:[%s0 + $0x28] sm:$0xff]
  %v40 = vld [vmem:[%s0 + $0x30] sm:$0xff]
  %v41 = vld [vmem:[%s0 + $0x38] sm:$0xff]
  %v42 = vld [vmem:[%s1] sm:$0xff]
  %v43 = vld [vmem:[%s1 + $0x8] sm:$0xff]
  %v44 = vld [vmem:[%s1 + $0x10] sm:$0xff]
  %v45 = vld [vmem:[%s1 + $0x18] sm:$0xff]
  %v46 = vld [vmem:[%s1 + $0x20] sm:$0xff]
  %v47 = vld [vmem:[%s1 + $0x28] sm:$0xff]
  %v48 = vld [vmem:[%s1 + $0x30] sm:$0xff]
  %v49 = vld [vmem:[%s1 + $0x38] sm:$0xff]
  %v50 = vld [vmem:[%s1 + $0x40] sm:$0xff]
  %v51 = vld [vmem:[%s1 + $0x48] sm:$0xff]
  %v52 = vld [vmem:[%s1 + $0x50] sm:$0xff]
  %v53 = vld [vmem:[%s1 + $0x58] sm:$0xff]
  %v54 = vld [vmem:[%s1 + $0x60] sm:$0xff]
  %v55 = vld [vmem:[%s1 + $0x68] sm:$0xff]
  %v56 = vld [vmem:[%s1 + $0x70] sm:$0xff]
  %v57 = vld [vmem:[%s1 + $0x78] sm:$0xff]
  %v58 = vld [vmem:[%s1 + $0x80] sm:$0xff]
  %v59 = vld [vmem:[%s1 + $0x88] sm:$0xff]
  %v60 = vld [vmem:[%s1 + $0x90] sm:$0xff]
  %v61 = vld [vmem:[%s1 + $0x98] sm:$0xff]
  %v62 = vld [vmem:[%s1 + $0xa0] sm:$0xff]
  %v63 = vld [vmem:[%s1 + $0xa8] sm:$0xff]
  %v64 = vld [vmem:[%s1 + $0xb0] sm:$0xff]
  %v65 = vld [vmem:[%s1 + $0xb8] sm:$0xff]
  %v66 = vld [vmem:[%s1 + $0xc0] sm:$0xff]
  %v67 = vld [vmem:[%s1 + $0xc8] sm:$0xff]
  %v68 = vld [vmem:[%s1 + $0xd0] sm:$0xff]
  %v69 = vld [vmem:[%s1 + $0xd8] sm:$0xff]
  %v70 = vld [vmem:[%s1 + $0xe0] sm:$0xff]
  %v71 = vld [vmem:[%s1 + $0xe8] sm:$0xff]
  %v72 = vld [vmem:[%s1 + $0xf0] sm:$0xff]
  %v73 = vld [vmem:[%s1 + $0xf8] sm:$0xff]
  %v74 = vld [vmem:[%s2] sm:$0x1]
  %v76 = vlaneseq
  %v77 = vshrl.u32 %v76, 7
  %v78 = vsub.s32 0, %v77
  %v79 = vrot.slane %v74, %v78
  %81 = vmatprep.subr.mxu0 0.0
  %82 = vmatpush1.msra.mxu0 %v57
  %83 = vmatprep.subr.mxu0 0.0
  %84 = vmatpush1.msra.mxu0 %v56
  %85 = vmatprep.subr.mxu0 0.0
  %86 = vmatpush1.msra.mxu0 %v55
  %87 = vmatprep.subr.mxu0 0.0
  %88 = vmatpush1.msra.mxu0 %v54
  %89 = vmatprep.subr.mxu0 0.0
  %90 = vmatpush1.msra.mxu0 %v53
  %91 = vmatprep.subr.mxu0 0.0
  %92 = vmatpush1.msra.mxu0 %v52
  %93 = vmatprep.subr.mxu0 0.0
  %94 = vmatpush1.msra.mxu0 %v51
  %95 = vmatprep.subr.mxu0 0.0
  %96 = vmatpush1.msra.mxu0 %v50
  %97 = vmatprep.subr.mxu0 0.0
  %98 = vmatpush1.msra.mxu0 %v49
  %99 = vmatprep.subr.mxu0 0.0
  %100 = vmatpush1.msra.mxu0 %v48
  %101 = vmatprep.subr.mxu0 0.0
  %102 = vmatpush1.msra.mxu0 %v47
  %103 = vmatprep.subr.mxu0 0.0
  %104 = vmatpush1.msra.mxu0 %v46
  %105 = vmatprep.subr.mxu0 0.0
  %106 = vmatpush1.msra.mxu0 %v45
  %107 = vmatprep.subr.mxu0 0.0
  %108 = vmatpush1.msra.mxu0 %v44
  %109 = vmatprep.subr.mxu0 0.0
  %110 = vmatpush1.msra.mxu0 %v43
  %111 = vmatprep.subr.mxu0 0.0
  %112 = vmatpush1.msra.mxu0 %v42
  %113 = vmatprep.subr.mxu0 0.0
  %114 = vmatpush2.msra.mxu0 %v73
  %115 = vmatprep.subr.mxu0 0.0
  %116 = vmatpush2.msra.mxu0 %v72
  %117 = vmatprep.subr.mxu0 0.0
  %118 = vmatpush2.msra.mxu0 %v71
  %119 = vmatprep.subr.mxu0 0.0
  %120 = vmatpush2.msra.mxu0 %v70
  %121 = vmatprep.subr.mxu0 0.0
  %122 = vmatpush2.msra.mxu0 %v69
  %123 = vmatprep.subr.mxu0 0.0
  %124 = vmatpush2.msra.mxu0 %v68
  %125 = vmatprep.subr.mxu0 0.0
  %126 = vmatpush2.msra.mxu0 %v67
  %127 = vmatprep.subr.mxu0 0.0
  %128 = vmatpush2.msra.mxu0 %v66
  %129 = vmatprep.subr.mxu0 0.0
  %130 = vmatpush2.msra.mxu0 %v65
  %131 = vmatprep.subr.mxu0 0.0
  %132 = vmatpush2.msra.mxu0 %v64
  %133 = vmatprep.subr.mxu0 0.0
  %134 = vmatpush2.msra.mxu0 %v63
  %135 = vmatprep.subr.mxu0 0.0
  %136 = vmatpush2.msra.mxu0 %v62
  %137 = vmatprep.subr.mxu0 0.0
  %138 = vmatpush2.msra.mxu0 %v61
  %139 = vmatprep.subr.mxu0 0.0
  %140 = vmatpush2.msra.mxu0 %v60
  %141 = vmatprep.subr.mxu0 0.0
  %142 = vmatpush2.msra.mxu0 %v59
  %143 = vmatprep.subr.mxu0 0.0
  %144 = vmatpush2.msra.mxu0 %v58
  %145 = vmatprep.mubr.f32.mxu0 %v35
  %146 = vmatmul.mubr.f32.gmra.mxu0 %v34
  %v147 = vpop.f32.mrf.mxu0
  %v148 = vadd.f32 %v79, %v147
  %v149 = vpop.f32.mrf.mxu0
  %150 = vmatprep.mubr.f32.mxu0 %v37
  %151 = vmatmul.mubr.f32.gmra.mxu0 %v36
  %v152 = vpop.f32.mrf.mxu0
  %v153 = vadd.f32 %v79, %v152
  %v154 = vpop.f32.mrf.mxu0
  %155 = vmatprep.mubr.f32.mxu0 %v39
  %156 = vmatmul.mubr.f32.gmra.mxu0 %v38
  %v157 = vpop.f32.mrf.mxu0
  %v158 = vadd.f32 %v79, %v157
  %v159 = vpop.f32.mrf.mxu0
  %160 = vmatprep.mubr.f32.mxu0 %v41
  %161 = vmatmul.mubr.f32.gmra.mxu0 %v40
  %v162 = vpop.f32.mrf.mxu0
  %v163 = vadd.f32 %v79, %v162
  %v164 = vpop.f32.mrf.mxu0
  %165 = vdwg.mxu0
  %v166 = vmax.f32 %v148, 0.0
  %v167 = vmax.f32 %v153, 0.0
  %v168 = vmax.f32 %v158, 0.0
  %v169 = vmax.f32 %v163, 0.0
  %v170 = vld [vmem:[%s3] sm:$0xff]
  %v171 = vld [vmem:[%s3 + $0x8] sm:$0xff]
  %v172 = vld [vmem:[%s3 + $0x10] sm:$0xff]
  %v173 = vld [vmem:[%s3 + $0x18] sm:$0xff]
  %v174 = vld [vmem:[%s3 + $0x20] sm:$0xff]
  %v175 = vld [vmem:[%s3 + $0x28] sm:$0xff]
  %v176 = vld [vmem:[%s3 + $0x30] sm:$0xff]
  %v177 = vld [vmem:[%s3 + $0x38] sm:$0xff]
  %v178 = vld [vmem:[%s4] sm:$0x1]
  %v180 = vlaneseq
  %v181 = vshrl.u32 %v180, 7
  %v182 = vsub.s32 0, %v181
  %v183 = vrot.slane %v178, %v182
  %vm185 = vcmask 523264
  %v187 = vsel %vm185, %v166, 0
  %v190 = vsel %vm185, %v167, 0
  %v193 = vsel %vm185, %v168, 0
  %v196 = vsel %vm185, %v169, 0
  %198 = vmatprep.subr.mxu0 0.0
  %199 = vmatpush1.msra.mxu0 0.0
  %200 = vmatprep.subr.mxu0 0.0
  %201 = vmatpush1.msra.mxu0 0.0
  %202 = vmatprep.subr.mxu0 0.0
  %203 = vmatpush1.msra.mxu0 0.0
  %204 = vmatprep.subr.mxu0 0.0
  %205 = vmatpush1.msra.mxu0 0.0
  %206 = vmatprep.subr.mxu0 0.0
  %207 = vmatpush1.msra.mxu0 0.0
  %208 = vmatprep.subr.mxu0 0.0
  %209 = vmatpush1.msra.mxu0 0.0
  %210 = vmatprep.subr.mxu0 0.0
  %211 = vmatpush1.msra.mxu0 0.0
  %212 = vmatprep.subr.mxu0 0.0
  %213 = vmatpush1.msra.mxu0 0.0
  %214 = vmatprep.subr.mxu0 0.0
  %215 = vmatpush1.msra.mxu0 %v177
  %216 = vmatprep.subr.mxu0 0.0
  %217 = vmatpush1.msra.mxu0 %v176
  %218 = vmatprep.subr.mxu0 0.0
  %219 = vmatpush1.msra.mxu0 %v175
  %220 = vmatprep.subr.mxu0 0.0
  %221 = vmatpush1.msra.mxu0 %v174
  %222 = vmatprep.subr.mxu0 0.0
  %223 = vmatpush1.msra.mxu0 %v173
  %224 = vmatprep.subr.mxu0 0.0
  %225 = vmatpush1.msra.mxu0 %v172
  %226 = vmatprep.subr.mxu0 0.0
  %227 = vmatpush1.msra.mxu0 %v171
  %228 = vmatprep.subr.mxu0 0.0
  %229 = vmatpush1.msra.mxu0 %v170
  %230 = vmatprep.subr.mxu0 0.0
  %231 = vmatpush2.msra.mxu0 0.0
  %232 = vmatprep.subr.mxu0 0.0
  %233 = vmatpush2.msra.mxu0 0.0
  %234 = vmatprep.subr.mxu0 0.0
  %235 = vmatpush2.msra.mxu0 0.0
  %236 = vmatprep.subr.mxu0 0.0
  %237 = vmatpush2.msra.mxu0 0.0
  %238 = vmatprep.subr.mxu0 0.0
  %239 = vmatpush2.msra.mxu0 0.0
  %240 = vmatprep.subr.mxu0 0.0
  %241 = vmatpush2.msra.mxu0 0.0
  %242 = vmatprep.subr.mxu0 0.0
  %243 = vmatpush2.msra.mxu0 0.0
  %244 = vmatprep.subr.mxu0 0.0
  %245 = vmatpush2.msra.mxu0 0.0
  %246 = vmatprep.subr.mxu0 0.0
  %247 = vmatpush2.msra.mxu0 0.0
  %248 = vmatprep.subr.mxu0 0.0
  %249 = vmatpush2.msra.mxu0 0.0
  %250 = vmatprep.subr.mxu0 0.0
  %251 = vmatpush2.msra.mxu0 0.0
  %252 = vmatprep.subr.mxu0 0.0
  %253 = vmatpush2.msra.mxu0 0.0
  %254 = vmatprep.subr.mxu0 0.0
  %255 = vmatpush2.msra.mxu0 0.0
  %256 = vmatprep.subr.mxu0 0.0
  %257 = vmatpush2.msra.mxu0 0.0
  %258 = vmatprep.subr.mxu0 0.0
  %259 = vmatpush2.msra.mxu0 0.0
  %260 = vmatprep.subr.mxu0 0.0
  %261 = vmatpush2.msra.mxu0 0.0
  %262 = vmatprep.mubr.f32.mxu0 0.0
  %263 = vmatmul.mubr.f32.gmra.mxu0 %v187
  %v264 = vpop.f32.mrf.mxu0
  %v265 = vadd.f32 %v183, %v264
  %v266 = vpop.f32.mrf.mxu0
  %267 = vmatprep.mubr.f32.mxu0 0.0
  %268 = vmatmul.mubr.f32.gmra.mxu0 %v190
  %v269 = vpop.f32.mrf.mxu0
  %v270 = vadd.f32 %v183, %v269
  %v271 = vpop.f32.mrf.mxu0
  %272 = vmatprep.mubr.f32.mxu0 0.0
  %273 = vmatmul.mubr.f32.gmra.mxu0 %v193
  %v274 = vpop.f32.mrf.mxu0
  %v275 = vadd.f32 %v183, %v274
  %v276 = vpop.f32.mrf.mxu0
  %277 = vmatprep.mubr.f32.mxu0 0.0
  %278 = vmatmul.mubr.f32.gmra.mxu0 %v196
  %v279 = vpop.f32.mrf.mxu0
  %v280 = vadd.f32 %v183, %v279
  %v281 = vpop.f32.mrf.mxu0
  %282 = vdwg.mxu0
  %v283 = vld [vmem:[%s5] sm:$0xff]
  %v284 = vld [vmem:[%s5 + $0x8] sm:$0xff]
  %v285 = vld [vmem:[%s5 + $0x10] sm:$0xff]
  %v286 = vld [vmem:[%s5 + $0x18] sm:$0xff]
  %v287 = vld [vmem:[%s5 + $0x20] sm:$0xff]
  %v288 = vld [vmem:[%s5 + $0x28] sm:$0xff]
  %v289 = vld [vmem:[%s5 + $0x30] sm:$0xff]
  %v290 = vld [vmem:[%s5 + $0x38] sm:$0xff]
  %v291 = vld [vmem:[%s6] sm:$0x1]
  %v293 = vlaneseq
  %v294 = vshrl.u32 %v293, 7
  %v295 = vsub.s32 0, %v294
  %v296 = vrot.slane %v291, %v295
  %298 = vmatprep.subr.mxu0 0.0
  %299 = vmatpush1.msra.mxu0 0.0
  %300 = vmatprep.subr.mxu0 0.0
  %301 = vmatpush1.msra.mxu0 0.0
  %302 = vmatprep.subr.mxu0 0.0
  %303 = vmatpush1.msra.mxu0 0.0
  %304 = vmatprep.subr.mxu0 0.0
  %305 = vmatpush1.msra.mxu0 0.0
  %306 = vmatprep.subr.mxu0 0.0
  %307 = vmatpush1.msra.mxu0 0.0
  %308 = vmatprep.subr.mxu0 0.0
  %309 = vmatpush1.msra.mxu0 0.0
  %310 = vmatprep.subr.mxu0 0.0
  %311 = vmatpush1.msra.mxu0 0.0
  %312 = vmatprep.subr.mxu0 0.0
  %313 = vmatpush1.msra.mxu0 0.0
  %314 = vmatprep.subr.mxu0 0.0
  %315 = vmatpush1.msra.mxu0 %v290
  %316 = vmatprep.subr.mxu0 0.0
  %317 = vmatpush1.msra.mxu0 %v289
  %318 = vmatprep.subr.mxu0 0.0
  %319 = vmatpush1.msra.mxu0 %v288
  %320 = vmatprep.subr.mxu0 0.0
  %321 = vmatpush1.msra.mxu0 %v287
  %322 = vmatprep.subr.mxu0 0.0
  %323 = vmatpush1.msra.mxu0 %v286
  %324 = vmatprep.subr.mxu0 0.0
  %325 = vmatpush1.msra.mxu0 %v285
  %326 = vmatprep.subr.mxu0 0.0
  %327 = vmatpush1.msra.mxu0 %v284
  %328 = vmatprep.subr.mxu0 0.0
  %329 = vmatpush1.msra.mxu0 %v283
  %330 = vmatprep.subr.mxu0 0.0
  %331 = vmatpush2.msra.mxu0 0.0
  %332 = vmatprep.subr.mxu0 0.0
  %333 = vmatpush2.msra.mxu0 0.0
  %334 = vmatprep.subr.mxu0 0.0
  %335 = vmatpush2.msra.mxu0 0.0
  %336 = vmatprep.subr.mxu0 0.0
  %337 = vmatpush2.msra.mxu0 0.0
  %338 = vmatprep.subr.mxu0 0.0
  %339 = vmatpush2.msra.mxu0 0.0
  %340 = vmatprep.subr.mxu0 0.0
  %341 = vmatpush2.msra.mxu0 0.0
  %342 = vmatprep.subr.mxu0 0.0
  %343 = vmatpush2.msra.mxu0 0.0
  %344 = vmatprep.subr.mxu0 0.0
  %345 = vmatpush2.msra.mxu0 0.0
  %346 = vmatprep.subr.mxu0 0.0
  %347 = vmatpush2.msra.mxu0 0.0
  %348 = vmatprep.subr.mxu0 0.0
  %349 = vmatpush2.msra.mxu0 0.0
  %350 = vmatprep.subr.mxu0 0.0
  %351 = vmatpush2.msra.mxu0 0.0
  %352 = vmatprep.subr.mxu0 0.0
  %353 = vmatpush2.msra.mxu0 0.0
  %354 = vmatprep.subr.mxu0 0.0
  %355 = vmatpush2.msra.mxu0 0.0
  %356 = vmatprep.subr.mxu0 0.0
  %357 = vmatpush2.msra.mxu0 0.0
  %358 = vmatprep.subr.mxu0 0.0
  %359 = vmatpush2.msra.mxu0 0.0
  %360 = vmatprep.subr.mxu0 0.0
  %361 = vmatpush2.msra.mxu0 0.0
  %362 = vmatprep.mubr.f32.mxu0 0.0
  %363 = vmatmul.mubr.f32.gmra.mxu0 %v187
  %v364 = vpop.f32.mrf.mxu0
  %v365 = vadd.f32 %v296, %v364
  %v366 = vpop.f32.mrf.mxu0
  %367 = vmatprep.mubr.f32.mxu0 0.0
  %368 = vmatmul.mubr.f32.gmra.mxu0 %v190
  %v369 = vpop.f32.mrf.mxu0
  %v370 = vadd.f32 %v296, %v369
  %v371 = vpop.f32.mrf.mxu0
  %372 = vmatprep.mubr.f32.mxu0 0.0
  %373 = vmatmul.mubr.f32.gmra.mxu0 %v193
  %v374 = vpop.f32.mrf.mxu0
  %v375 = vadd.f32 %v296, %v374
  %v376 = vpop.f32.mrf.mxu0
  %377 = vmatprep.mubr.f32.mxu0 0.0
  %378 = vmatmul.mubr.f32.gmra.mxu0 %v196
  %v379 = vpop.f32.mrf.mxu0
  %v380 = vadd.f32 %v296, %v379
  %v381 = vpop.f32.mrf.mxu0
  %382 = vdwg.mxu0
  %v383 = vmax.f32 %v365, 0.0
  %v384 = vmax.f32 %v370, 0.0
  %v385 = vmax.f32 %v375, 0.0
  %v386 = vmax.f32 %v380, 0.0
  %v387 = vld [vmem:[%s7] sm:$0xff]
  %v388 = vld [vmem:[%s7 + $0x8] sm:$0xff]
  %v389 = vld [vmem:[%s7 + $0x10] sm:$0xff]
  %v390 = vld [vmem:[%s7 + $0x18] sm:$0xff]
  %v391 = vld [vmem:[%s7 + $0x20] sm:$0xff]
  %v392 = vld [vmem:[%s7 + $0x28] sm:$0xff]
  %v393 = vld [vmem:[%s7 + $0x30] sm:$0xff]
  %v394 = vld [vmem:[%s7 + $0x38] sm:$0xff]
  %v395 = vld [vmem:[%s7 + $0x40] sm:$0xff]
  %v396 = vld [vmem:[%s7 + $0x48] sm:$0xff]
  %v397 = vld [vmem:[%s7 + $0x50] sm:$0xff]
  %v398 = vld [vmem:[%s7 + $0x58] sm:$0xff]
  %v399 = vld [vmem:[%s7 + $0x60] sm:$0xff]
  %v400 = vld [vmem:[%s7 + $0x68] sm:$0xff]
  %v401 = vld [vmem:[%s7 + $0x70] sm:$0xff]
  %v402 = vld [vmem:[%s7 + $0x78] sm:$0xff]
  %v403 = vld [vmem:[%s8] sm:$0x3]
  %v405 = vlaneseq
  %v406 = vshrl.u32 %v405, 7
  %v407 = vsub.s32 0, %v406
  %v408 = vrot.slane %v403, %v407
  %v409 = vlaneseq
  %v410 = vshrl.u32 %v409, 7
  %v411 = vsub.s32 1, %v410
  %v412 = vrot.slane %v403, %v411
  %v416 = vsel %vm185, %v383, 0
  %v419 = vsel %vm185, %v384, 0
  %v422 = vsel %vm185, %v385, 0
  %v425 = vsel %vm185, %v386, 0
  %427 = vmatprep.subr.mxu0 0.0
  %428 = vmatpush1.msra.mxu0 0.0
  %429 = vmatprep.subr.mxu0 0.0
  %430 = vmatpush1.msra.mxu0 0.0
  %431 = vmatprep.subr.mxu0 0.0
  %432 = vmatpush1.msra.mxu0 0.0
  %433 = vmatprep.subr.mxu0 0.0
  %434 = vmatpush1.msra.mxu0 0.0
  %435 = vmatprep.subr.mxu0 0.0
  %436 = vmatpush1.msra.mxu0 0.0
  %437 = vmatprep.subr.mxu0 0.0
  %438 = vmatpush1.msra.mxu0 0.0
  %439 = vmatprep.subr.mxu0 0.0
  %440 = vmatpush1.msra.mxu0 0.0
  %441 = vmatprep.subr.mxu0 0.0
  %442 = vmatpush1.msra.mxu0 0.0
  %443 = vmatprep.subr.mxu0 %v402
  %444 = vmatpush1.msra.mxu0 %v401
  %445 = vmatprep.subr.mxu0 %v400
  %446 = vmatpush1.msra.mxu0 %v399
  %447 = vmatprep.subr.mxu0 %v398
  %448 = vmatpush1.msra.mxu0 %v397
  %449 = vmatprep.subr.mxu0 %v396
  %450 = vmatpush1.msra.mxu0 %v395
  %451 = vmatprep.subr.mxu0 %v394
  %452 = vmatpush1.msra.mxu0 %v393
  %453 = vmatprep.subr.mxu0 %v392
  %454 = vmatpush1.msra.mxu0 %v391
  %455 = vmatprep.subr.mxu0 %v390
  %456 = vmatpush1.msra.mxu0 %v389
  %457 = vmatprep.subr.mxu0 %v388
  %458 = vmatpush1.msra.mxu0 %v387
  %459 = vmatprep.subr.mxu0 0.0
  %460 = vmatpush2.msra.mxu0 0.0
  %461 = vmatprep.subr.mxu0 0.0
  %462 = vmatpush2.msra.mxu0 0.0
  %463 = vmatprep.subr.mxu0 0.0
  %464 = vmatpush2.msra.mxu0 0.0
  %465 = vmatprep.subr.mxu0 0.0
  %466 = vmatpush2.msra.mxu0 0.0
  %467 = vmatprep.subr.mxu0 0.0
  %468 = vmatpush2.msra.mxu0 0.0
  %469 = vmatprep.subr.mxu0 0.0
  %470 = vmatpush2.msra.mxu0 0.0
  %471 = vmatprep.subr.mxu0 0.0
  %472 = vmatpush2.msra.mxu0 0.0
  %473 = vmatprep.subr.mxu0 0.0
  %474 = vmatpush2.msra.mxu0 0.0
  %475 = vmatprep.subr.mxu0 0.0
  %476 = vmatpush2.msra.mxu0 0.0
  %477 = vmatprep.subr.mxu0 0.0
  %478 = vmatpush2.msra.mxu0 0.0
  %479 = vmatprep.subr.mxu0 0.0
  %480 = vmatpush2.msra.mxu0 0.0
  %481 = vmatprep.subr.mxu0 0.0
  %482 = vmatpush2.msra.mxu0 0.0
  %483 = vmatprep.subr.mxu0 0.0
  %484 = vmatpush2.msra.mxu0 0.0
  %485 = vmatprep.subr.mxu0 0.0
  %486 = vmatpush2.msra.mxu0 0.0
  %487 = vmatprep.subr.mxu0 0.0
  %488 = vmatpush2.msra.mxu0 0.0
  %489 = vmatprep.subr.mxu0 0.0
  %490 = vmatpush2.msra.mxu0 0.0
  %491 = vmatprep.mubr.f32.mxu0 0.0
  %492 = vmatmul.mubr.f32.gmra.mxu0 %v416
  %v493 = vpop.f32.mrf.mxu0
  %v494 = vadd.f32 %v408, %v493
  %v495 = vpop.f32.mrf.mxu0
  %v496 = vadd.f32 %v412, %v495
  %497 = vmatprep.mubr.f32.mxu0 0.0
  %498 = vmatmul.mubr.f32.gmra.mxu0 %v419
  %v499 = vpop.f32.mrf.mxu0
  %v500 = vadd.f32 %v408, %v499
  %v501 = vpop.f32.mrf.mxu0
  %v502 = vadd.f32 %v412, %v501
  %503 = vmatprep.mubr.f32.mxu0 0.0
  %504 = vmatmul.mubr.f32.gmra.mxu0 %v422
  %v505 = vpop.f32.mrf.mxu0
  %v506 = vadd.f32 %v408, %v505
  %v507 = vpop.f32.mrf.mxu0
  %v508 = vadd.f32 %v412, %v507
  %509 = vmatprep.mubr.f32.mxu0 0.0
  %510 = vmatmul.mubr.f32.gmra.mxu0 %v425
  %v511 = vpop.f32.mrf.mxu0
  %v512 = vadd.f32 %v408, %v511
  %v513 = vpop.f32.mrf.mxu0
  %v514 = vadd.f32 %v412, %v513
  %515 = vdwg.mxu0
  %vm516 = vcmask 261120
  %517 = vst.msk [vmem:[%s9] sm:$0xff] %vm516, %v265
  %519 = vrot.lane.b32.xlu0 %v270, 32
  %v520 = vpop.permute.xlu0 %519
  %vm522 = vcmask 523520
  %523 = vst.msk [vmem:[%s9] sm:$0xff] %vm522, %v520
  %525 = vrot.lane.b32.xlu0 %v275, 64
  %v526 = vpop.permute.xlu0 %525
  %vm528 = vcmask 785920
  %529 = vst.msk [vmem:[%s9] sm:$0xff] %vm528, %v526
  %531 = vrot.lane.b32.xlu0 %v280, 96
  %v532 = vpop.permute.xlu0 %531
  %vm534 = vcmask 1048320
  %535 = vst.msk [vmem:[%s9] sm:$0xff] %vm534, %v532
  %v536 = vsub.f32 %v34, %v494
  %v537 = vsub.f32 %v35, %v496
  %v538 = vsub.f32 %v36, %v500
  %v539 = vsub.f32 %v37, %v502
  %v540 = vsub.f32 %v38, %v506
  %v541 = vsub.f32 %v39, %v508
  %v542 = vsub.f32 %v40, %v512
  %v543 = vsub.f32 %v41, %v514
  %s544 = smul.u32 0, 32
  %v545 = vlaneseq
  %v546 = vshrl.u32 %v545, 7
  %v547 = vadd.s32 %v546, 8
  %v548 = vadd.s32 %v546, 16
  %v549 = vadd.s32 %v546, 24
  %v550 = vstv %s544
  %v551 = vadd.s32 %v550, %v546
  %v552 = vadd.s32 %v550, %v547
  %v553 = vadd.s32 %v550, %v548
  %v554 = vadd.s32 %v550, %v549
  %vm555 = vcmp.lt.s32.totalorder %v551, 16
  %vm556 = vcmp.lt.s32.totalorder %v552, 16
  %vm557 = vcmp.lt.s32.totalorder %v553, 16
  %vm558 = vcmp.lt.s32.totalorder %v554, 16
  %v559 = vsel %vm555, 1, 0
  %v560 = vsel %vm556, 1, 0
  %v561 = vsel %vm557, 1, 0
  %v562 = vsel %vm558, 1, 0
  %vm563 = vcmp.eq.s32.totalorder %v559, 1
  %vm564 = vcmp.eq.s32.totalorder %v560, 1
  %vm565 = vcmp.eq.s32.totalorder %v561, 1
  %vm566 = vcmp.eq.s32.totalorder %v562, 1
  %v567 = vsel %vm563, %v536, 0.0
  %v568 = vsel %vm563, %v537, 0.0
  %v569 = vsel %vm564, %v538, 0.0
  %v570 = vsel %vm564, %v539, 0.0
  %v571 = vsel %vm565, %v540, 0.0
  %v572 = vsel %vm565, %v541, 0.0
  %v573 = vsel %vm566, %v542, 0.0
  %v574 = vsel %vm566, %v543, 0.0
  %v575 = vmul.f32 %v567, %v567
  %v576 = vmul.f32 %v568, %v568
  %v577 = vmul.f32 %v569, %v569
  %v578 = vmul.f32 %v570, %v570
  %v579 = vmul.f32 %v571, %v571
  %v580 = vmul.f32 %v572, %v572
  %v581 = vmul.f32 %v573, %v573
  %v582 = vmul.f32 %v574, %v574
  %v583 = vadd.f32 %v575, %v576
  %v584 = vadd.f32 %v583, %v577
  %v585 = vadd.f32 %v584, %v578
  %v586 = vadd.f32 %v585, %v579
  %v587 = vadd.f32 %v586, %v580
  %v588 = vadd.f32 %v587, %v581
  %v589 = vadd.f32 %v588, %v582
  %590 = vadd.xlane.f32.xlu0 %v589
  %v591 = vpop.xlane.xlu0 %590
  %v592 = vrot.slane %v591, 4
  %v593 = vadd.f32 %v591, %v592
  %v594 = vrot.slane %v593, 2
  %v595 = vadd.f32 %v593, %v594
  %v596 = vrot.slane %v595, 1
  %v597 = vadd.f32 %v595, %v596
  %s598 = vtos %v597
  %v599 = vlaneseq
  %v600 = vand.u32 %v599, 127
  %vm601 = vcmp.eq.s32.totalorder %v546, 0
  %vm602 = vcmp.eq.s32.totalorder %v600, 0
  %vm603 = vmand %vm601, %vm602
  %v604 = vstv %s598
  %v605 = vsel %vm603, %v604, 0.0
  %606 = vst [vmem:[%s10] sm:$0xff] %v605
  // Predicated region
  $region38: #{nn_embedding_forward.1} parent=0 // pred_check
    _
  $region39: #{nn_embedding_forward.1} parent=0 // pred_check_branch
    %608 = sbr.rel (0) target = $region41
  $region40: #{nn_embedding_forward.1} parent=0 // pred_region
    _
  $region41: #{nn_embedding_forward.1} parent=0 // pred_fallthru
    _
  // Predicated region
  $region42: #{nn_embedding_forward.1} parent=0 // pred_check
    _
  $region43: #{nn_embedding_forward.1} parent=0 // pred_check_branch
    %610 = sbr.rel (0) target = $region45
  $region44: #{nn_embedding_forward.1} parent=0 // pred_region
    _
  $region45: #{nn_embedding_forward.1} parent=0 // pred_fallthru
    _
  // Predicated region
  $region46: #{nn_embedding_forward.1} parent=0 // pred_check
    _
  $region47: #{nn_embedding_forward.1} parent=0 // pred_check_branch
    %612 = sbr.rel (0) target = $region49
  $region48: #{nn_embedding_forward.1} parent=0 // pred_region
    _
  $region49: #{nn_embedding_forward.1} parent=0 // pred_fallthru
    _
  // Predicated region
  $region50: #{nn_embedding_forward.1} parent=0 // pred_check
    _
  $region51: #{nn_embedding_forward.1} parent=0 // pred_check_branch
    %614 = sbr.rel (0) target = $region53
  $region52: #{nn_embedding_forward.1} parent=0 // pred_region
    _
  $region53: #{nn_embedding_forward.1} parent=0 // pred_fallthru
    _

</llo_original>
